<compile_context>
chip_gen: v7x
topology: tpu7x:2x2x1
jax: 0.10.0
libtpu: 0.0.40
codegen_flags: <defaults>
</compile_context>

<pallas_src>
import math

import jax
import jax.numpy as jnp
from jax.experimental import pallas as pl
from jax.experimental.pallas import tpu as pltpu

LN_EPS = 1e-5

# Dtype fed to the recurrence MXU matmul.  float32 == exact PyTorch numerics.
# bfloat16 halves W_hh HBM/VMEM footprint on v6e/v7x (changes numerics slightly).
MATMUL_DTYPE = jnp.float32


def lstm_ln_kernel(gx_ref, w_hh_hbm, gamma_ref, beta_ref, out_ref,
                   w_sc, h_sc, c_sc, dma_sem):
    """One (batch-block, time-chunk) grid step of the LSTM recurrence.

    gx_ref: (t_chunk, b_blk, 4H) precomputed input projection (bias folded in),
            gate column order [i | f | o | g].

    NOTE: the time axis (grid axis 1) must stay innermost and sequential
    ("arbitrary"): h_sc/c_sc carry state across chunks and are re-zeroed only at
    t_idx == 0, so reordering the grid would leak state across batch blocks.
    """
    t_idx = pl.program_id(1)            # time-chunk index (sequential)
    n_t = pl.num_programs(1)
    T = gx_ref.shape[0]
    H = h_sc.shape[-1]

    @pl.when(t_idx == 0)
    def _init():
        # Single-buffered resident W_hh: one DMA per batch block, constant thereafter
        # (vs. 2x auto-pipeline buffers for an operand whose block index never changes).
        cp = pltpu.make_async_copy(w_hh_hbm, w_sc, dma_sem)
        cp.start()
        cp.wait()
        h_sc[...] = jnp.zeros_like(h_sc)
        c_sc[...] = jnp.zeros_like(c_sc)

    w_hh = w_sc[...]                    # (H, 4H), resident across the whole chunk

    # TODO(synk): driving the MXU directly (pltpu.matmul_push_rhs once per chunk +
    # matmul_acc_lhs/matmul_pop per step) would remove the per-step weight re-push from
    # the serial critical path; kept as jnp.dot for portability.
    def step(tau, carry):
        h, c = carry
        gates = gx_ref[tau] + jnp.dot(h.astype(w_hh.dtype), w_hh,
                                      preferred_element_type=jnp.float32)
        # Gate slabs are lane-aligned whenever H % 128 == 0 (production sizes);
        # one fused sigmoid covers [i | f | o], one tanh covers the cell candidate.
        sig = jax.nn.sigmoid(gates[:, :3 * H])
        g_g = jnp.tanh(gates[:, 3 * H:])
        i_g = sig[:, :H]
        f_g = sig[:, H:2 * H]
        o_g = sig[:, 2 * H:]
        c_new = f_g * c + i_g * g_g
        h_new = o_g * jnp.tanh(c_new)
        return h_new, c_new

    # Cap unrolling: fully unrolling long chunks spills the 64-vreg file.
    h, c = jax.lax.fori_loop(0, T, step, (h_sc[...], c_sc[...]),
                             unroll=min(T, 8))

    # Persist carry across time chunks (touched once per chunk, not per step).
    h_sc[...] = h
    c_sc[...] = c

    @pl.when(t_idx == n_t - 1)
    def _finalize():
        # LayerNorm over the hidden dim of the final hidden state.
        mean = jnp.mean(h, axis=-1, keepdims=True)
        var = jnp.mean((h - mean) ** 2, axis=-1, keepdims=True)
        normed = (h - mean) * jax.lax.rsqrt(var + LN_EPS)
        out_ref[...] = (normed * gamma_ref[...] + beta_ref[...]).astype(out_ref.dtype)


def _round_up(n, m):
    return ((n + m - 1) // m) * m


def _largest_divisor_le(n, cap):
    cap = max(1, min(n, cap))
    for d in range(cap, 0, -1):
        if n % d == 0:
            return d
    return 1


def _tpu_budget():
    """Return (vmem_limit_bytes, num_tensorcores) for the local device, conservatively."""
    vmem_phys = None
    try:
        vmem_phys = int(pltpu.get_tpu_info().vmem_capacity_bytes)
    except Exception:
        vmem_phys = None
    try:
        kind = jax.devices()[0].device_kind.lower()
    except Exception:
        kind = ""
    two_tc = ("v7" in kind) or ("7x" in kind)        # v7x: 2 TensorCores / chip
    if not vmem_phys or vmem_phys <= 0:
        vmem_phys = (64 << 20) if two_tc else (128 << 20)   # v7x: 64 MiB/TC, v5e/v6e: 128 MiB
    # Leave headroom for compiler-internal scratch: ~48 MiB on v7x, ~96 MiB on v5e/v6e.
    vmem_limit = min(vmem_phys * 3 // 4, vmem_phys - (16 << 20))
    vmem_limit = max(vmem_limit, 32 << 20)
    if two_tc:
        vmem_limit = min(vmem_limit, 48 << 20)
    return int(vmem_limit), (2 if two_tc else 1)


def bilstm_forward(x, kparams, *, t_chunk=None):
    """x: (B, S, I) float32 -> (B, 1, H) float32 (matches the PyTorch module output)."""
    B, S, I = x.shape
    H = kparams["w_hh_t"].shape[0]
    G = 4 * H

    vmem_limit, num_tc = _tpu_budget()

    # Split the batch across grid blocks ONLY on 2-TC chips (v7x); on single-TC v5e/v6e
    # the split is a serialized loop (pure overhead).
    # TODO(synk): on v7x, verify "parallel" shards the batch axis across both cores
    # (otherwise switch that axis to pltpu.CORE_PARALLEL).
    nb = 2 if (num_tc == 2 and B >= 16) else 1
    # Pad the per-block batch to the f32 sublane (8) so vregs / MXU pushes are full tiles.
    b_blk = _round_up(-(-B // nb), 8)
    B_pad = nb * b_blk
    x_p = x if B_pad == B else jnp.pad(x, ((0, B_pad - B), (0, 0), (0, 0)))

    # Hoisted input projection: one large MXU matmul over all timesteps, bias folded in,
    # laid out (nb, S, b_blk, 4H) so each batch block's per-chunk DMA is a contiguous slab.
    gates_x = jnp.einsum("bsi,ig->sbg", x_p, kparams["w_ih_t"],
                         preferred_element_type=jnp.float32) + kparams["b"]
    gates_x = gates_x.reshape(S, nb, b_blk, G).transpose(1, 0, 2, 3)
    # TODO(synk): on bandwidth-bound v5e, store gates_x in bf16 (or fuse the projection
    # per chunk) to cut the dominant HBM stream; kept f32 here for exact numerics.

    # Derive the time chunk from the VMEM budget:
    #   2 * t_chunk * b_blk * 4H * itemsize  (double-buffered gates_x stream)
    # + H * 4H * itemsize                    (W_hh, single-buffered scratch)
    # + small h/c/out/gamma/beta terms       <= vmem_limit (minus slack)
    itemsize = gates_x.dtype.itemsize
    w_bytes = H * G * kparams["w_hh_t"].dtype.itemsize
    fixed = w_bytes + 4 * b_blk * H * 4 + 4 * H * 4
    budget = vmem_limit - fixed - (4 << 20)          # slack for compiler internals
    per_t = 2 * b_blk * G * itemsize
    t_cap = max(1, budget // per_t)
    if t_chunk is None or S % t_chunk != 0:
        cap = min(t_cap, 512) if t_chunk is None else min(t_chunk, t_cap, 512)
        t_chunk = _largest_divisor_le(S, cap)
    nt = S // t_chunk

    out = pl.pallas_call(
        lstm_ln_kernel,
        out_shape=jax.ShapeDtypeStruct((B_pad, H), jnp.float32),
        grid_spec=pltpu.PrefetchScalarGridSpec(
            num_scalar_prefetch=0,
            grid=(nb, nt),
            in_specs=[
                # gates_x chunk: leading batch-block axis squeezed, contiguous DMA per chunk
                pl.BlockSpec((None, t_chunk, b_blk, G), lambda b, t: (b, t, 0, 0)),
                # W_hh^T stays in HBM; DMA'd once per batch block into VMEM scratch
                pl.BlockSpec(memory_space=pl.ANY),
                pl.BlockSpec((1, H), lambda b, t: (0, 0)),   # LN gamma (constant block)
                pl.BlockSpec((1, H), lambda b, t: (0, 0)),   # LN beta  (constant block)
            ],
            out_specs=pl.BlockSpec((b_blk, H), lambda b, t: (b, 0)),
            scratch_shapes=[
                pltpu.VMEM((H, G), kparams["w_hh_t"].dtype),   # resident W_hh (single buffer)
                pltpu.VMEM((b_blk, H), jnp.float32),           # h carry across chunks
                pltpu.VMEM((b_blk, H), jnp.float32),           # c carry across chunks
                pltpu.SemaphoreType.DMA(()),                   # W_hh DMA completion
            ],
        ),
        compiler_params=pltpu.CompilerParams(
            dimension_semantics=("parallel", "arbitrary"),
            vmem_limit_bytes=vmem_limit,
        ),
    )(gates_x, kparams["w_hh_t"], kparams["gamma"], kparams["beta"])

    # PyTorch: h (1, B, H) -> LayerNorm -> transpose(1, 0) -> (B, 1, H); drop batch padding.
    return out[:B, None, :]


def init_torch_params(key, in_feature, hidden):
    """Parameters in PyTorch nn.LSTM / nn.LayerNorm layout, gate order [i, f, g, o]."""
    k = 1.0 / math.sqrt(hidden)
    k_ih, k_hh, k_bi, k_bh = jax.random.split(key, 4)
    return {
        "w_ih": jax.random.uniform(k_ih, (4 * hidden, in_feature), jnp.float32, -k, k),
        "w_hh": jax.random.uniform(k_hh, (4 * hidden, hidden), jnp.float32, -k, k),
        "b_ih": jax.random.uniform(k_bi, (4 * hidden,), jnp.float32, -k, k),
        "b_hh": jax.random.uniform(k_bh, (4 * hidden,), jnp.float32, -k, k),
        "gamma": jnp.ones((hidden,), jnp.float32),
        "beta": jnp.zeros((hidden,), jnp.float32),
    }


def prepare_kernel_params(p):
    """Transpose weights, fuse biases, permute gate columns [i,f,g,o] -> [i,f,o,g]
    (single fused sigmoid over the first 3H columns), pre-cast W_hh to MATMUL_DTYPE."""
    def reorder(wt):  # columns [i | f | g | o] -> [i | f | o | g]
        i, f, g, o = jnp.split(wt, 4, axis=-1)
        return jnp.concatenate([i, f, o, g], axis=-1)

    return {
        "w_ih_t": reorder(p["w_ih"].T),                              # (I, 4H)
        "w_hh_t": reorder(p["w_hh"].T).astype(MATMUL_DTYPE),         # (H, 4H), pre-cast
        "b": reorder((p["b_ih"] + p["b_hh"])[None, :]),              # (1, 4H)
        "gamma": p["gamma"][None, :],                                # (1, H)
        "beta": p["beta"][None, :],                                  # (1, H)
    }


def bilstm_ref(x, p):
    """Pure-JAX reference in PyTorch layout/gate-order for correctness checking."""
    B, S, I = x.shape
    H = p["w_hh"].shape[1]
    w_ih_t, w_hh_t = p["w_ih"].T, p["w_hh"].T
    b = p["b_ih"] + p["b_hh"]

    def step(carry, x_t):
        h, c = carry
        gates = x_t @ w_ih_t + h @ w_hh_t + b
        i = jax.nn.sigmoid(gates[:, :H])
        f = jax.nn.sigmoid(gates[:, H:2 * H])
        g = jnp.tanh(gates[:, 2 * H:3 * H])
        o = jax.nn.sigmoid(gates[:, 3 * H:])
        c = f * c + i * g
        h = o * jnp.tanh(c)
        return (h, c), None

    init = (jnp.zeros((B, H), jnp.float32), jnp.zeros((B, H), jnp.float32))
    (h, _), _ = jax.lax.scan(step, init, jnp.transpose(x, (1, 0, 2)))
    mean = jnp.mean(h, axis=-1, keepdims=True)
    var = jnp.mean((h - mean) ** 2, axis=-1, keepdims=True)
    hn = (h - mean) * jax.lax.rsqrt(var + LN_EPS) * p["gamma"] + p["beta"]
    return hn[:, None, :]


if __name__ == "__main__":
    B, S, I, H = 2, 8, 16, 32  # batch, seq, lstm_in_feature, lstm_hidden_dim

    key = jax.random.PRNGKey(0)
    kx, kp = jax.random.split(key)
    x = jax.random.normal(kx, (B, S, I), jnp.float32)

    torch_params = init_torch_params(kp, I, H)
    kparams = prepare_kernel_params(torch_params)

    out = jax.block_until_ready(bilstm_forward(x, kparams))
    ref = bilstm_ref(x, torch_params)

    assert out.shape == (B, 1, H), out.shape
    assert jnp.allclose(out, ref, atol=1e-5, rtol=1e-5), "mismatch vs reference"

    print("KERNEL_OK")
</pallas_src>

<mosaic_0001>
module attributes {stable_mosaic.version = 11 : i64} {
  func.func @lstm_ln_kernel(%arg0: i32, %arg1: i32, %arg2: memref<1x8x8x128xf32, #tpu.memory_space<vmem>>, %arg3: memref<32x128xf32, #tpu.memory_space<any>>, %arg4: memref<1x32xf32, #tpu.memory_space<vmem>>, %arg5: memref<1x32xf32, #tpu.memory_space<vmem>>, %arg6: memref<8x32xf32, #tpu.memory_space<vmem>>, %arg7: memref<32x128xf32, #tpu.memory_space<vmem>>, %arg8: memref<8x32xf32, #tpu.memory_space<vmem>>, %arg9: memref<8x32xf32, #tpu.memory_space<vmem>>, %arg10: memref<!tpu.dma_semaphore, #tpu.memory_space<semaphore_mem>>) attributes {dimension_semantics = [#tpu.dimension_semantics<parallel>, #tpu.dimension_semantics<arbitrary>], iteration_bounds = array<i64: 1, 1>, scalar_prefetch = 0 : i64, scratch_operands = 4 : i64, tpu.core_type = #tpu.core_type<tc>, window_params = [{transform_indices = @transform_0, window_bounds = array<i64: 1, 8, 8, 128>}, {}, {pipeline_mode = #tpu.pipeline_mode<synchronous>, transform_indices = @transform_2, window_bounds = array<i64: 1, 32>}, {pipeline_mode = #tpu.pipeline_mode<synchronous>, transform_indices = @transform_3, window_bounds = array<i64: 1, 32>}, {transform_indices = @transform_4, window_bounds = array<i64: 8, 32>}]} {
    %c0_i32 = arith.constant 0 : i32
    %0 = arith.cmpi eq, %arg1, %c0_i32 : i32
    %1 = arith.extui %0 : i1 to i32
    %c0_i32_0 = arith.constant 0 : i32
    %2 = arith.cmpi ne, %1, %c0_i32_0 : i32
    scf.if %2 {
      tpu.enqueue_dma source(%arg3 : memref<32x128xf32, #tpu.memory_space<any>>) target(%arg7 : memref<32x128xf32, #tpu.memory_space<vmem>>) target_semaphore(%arg10 : memref<!tpu.dma_semaphore, #tpu.memory_space<semaphore_mem>>)
      tpu.wait_dma2 semaphore(%arg10 : memref<!tpu.dma_semaphore, #tpu.memory_space<semaphore_mem>>) src(%arg3 : memref<32x128xf32, #tpu.memory_space<any>>) dst(%arg7 : memref<32x128xf32, #tpu.memory_space<vmem>>)
      %cst_52 = arith.constant 0.000000e+00 : f32
      %179 = vector.broadcast %cst_52 : f32 to vector<8x32xf32>
      %c0_53 = arith.constant 0 : index
      %c0_54 = arith.constant 0 : index
      %180 = vector.load %arg8[%c0_53, %c0_54] : memref<8x32xf32, #tpu.memory_space<vmem>>, vector<8x32xf32>
      tpu.vector_store %arg8[%c0_53, %c0_54], %179 {strides = array<i32>} : memref<8x32xf32, #tpu.memory_space<vmem>>, vector<8x32xf32>,
      %cst_55 = arith.constant 0.000000e+00 : f32
      %181 = vector.broadcast %cst_55 : f32 to vector<8x32xf32>
      %c0_56 = arith.constant 0 : index
      %c0_57 = arith.constant 0 : index
      %182 = vector.load %arg9[%c0_56, %c0_57] : memref<8x32xf32, #tpu.memory_space<vmem>>, vector<8x32xf32>
      tpu.vector_store %arg9[%c0_56, %c0_57], %181 {strides = array<i32>} : memref<8x32xf32, #tpu.memory_space<vmem>>, vector<8x32xf32>,
    } else {
    }
    %c0 = arith.constant 0 : index
    %c0_1 = arith.constant 0 : index
    %3 = vector.load %arg7[%c0, %c0_1] : memref<32x128xf32, #tpu.memory_space<vmem>>, vector<32x128xf32>
    %c0_2 = arith.constant 0 : index
    %c0_3 = arith.constant 0 : index
    %4 = vector.load %arg8[%c0_2, %c0_3] : memref<8x32xf32, #tpu.memory_space<vmem>>, vector<8x32xf32>
    %c0_4 = arith.constant 0 : index
    %c0_5 = arith.constant 0 : index
    %5 = vector.load %arg9[%c0_4, %c0_5] : memref<8x32xf32, #tpu.memory_space<vmem>>, vector<8x32xf32>
    %c0_i32_6 = arith.constant 0 : i32
    %c0_7 = arith.constant 0 : index
    %6 = arith.index_cast %c0_i32_6 : i32 to index
    %c0_8 = arith.constant 0 : index
    %c0_9 = arith.constant 0 : index
    %7 = vector.load %arg2[%c0_7, %6, %c0_8, %c0_9] : memref<1x8x8x128xf32, #tpu.memory_space<vmem>>, vector<1x1x8x128xf32>
    %8 = vector.shape_cast %7 : vector<1x1x8x128xf32> to vector<8x128xf32>
    %cst = arith.constant dense<0.000000e+00> : vector<8x128xf32>
    %9 = tpu.matmul %4, %3, %cst {dimension_numbers = #tpu.dot_dimension_numbers<[1], [0], [0], [1], [0, 0, 1, 1], [], []>} : vector<8x32xf32>, vector<32x128xf32>, vector<8x128xf32> -> vector<8x128xf32>
    %10 = arith.addf %8, %9 : vector<8x128xf32>
    %11 = vector.extract_strided_slice %10 {offsets = [0, 0], sizes = [8, 96], strides = [1, 1]} : vector<8x128xf32> to vector<8x96xf32>
    %12 = arith.negf %11 : vector<8x96xf32>
    %13 = math.exp %12 : vector<8x96xf32>
    %cst_10 = arith.constant 1.000000e+00 : f32
    %14 = vector.broadcast %cst_10 : f32 to vector<8x96xf32>
    %15 = arith.addf %14, %13 : vector<8x96xf32>
    %16 = arith.divf %14, %15 : vector<8x96xf32>
    %17 = vector.extract_strided_slice %10 {offsets = [0, 96], sizes = [8, 32], strides = [1, 1]} : vector<8x128xf32> to vector<8x32xf32>
    %18 = math.tanh %17 : vector<8x32xf32>
    %19 = vector.extract_strided_slice %16 {offsets = [0, 0], sizes = [8, 32], strides = [1, 1]} : vector<8x96xf32> to vector<8x32xf32>
    %20 = vector.extract_strided_slice %16 {offsets = [0, 32], sizes = [8, 32], strides = [1, 1]} : vector<8x96xf32> to vector<8x32xf32>
    %21 = vector.extract_strided_slice %16 {offsets = [0, 64], sizes = [8, 32], strides = [1, 1]} : vector<8x96xf32> to vector<8x32xf32>
    %22 = arith.mulf %20, %5 : vector<8x32xf32>
    %23 = arith.mulf %19, %18 : vector<8x32xf32>
    %24 = arith.addf %22, %23 : vector<8x32xf32>
    %25 = math.tanh %24 : vector<8x32xf32>
    %26 = arith.mulf %21, %25 : vector<8x32xf32>
    %c1_i32 = arith.constant 1 : i32
    %c0_11 = arith.constant 0 : index
    %27 = arith.index_cast %c1_i32 : i32 to index
    %c0_12 = arith.constant 0 : index
    %c0_13 = arith.constant 0 : index
    %28 = vector.load %arg2[%c0_11, %27, %c0_12, %c0_13] : memref<1x8x8x128xf32, #tpu.memory_space<vmem>>, vector<1x1x8x128xf32>
    %29 = vector.shape_cast %28 : vector<1x1x8x128xf32> to vector<8x128xf32>
    %cst_14 = arith.constant dense<0.000000e+00> : vector<8x128xf32>
    %30 = tpu.matmul %26, %3, %cst_14 {dimension_numbers = #tpu.dot_dimension_numbers<[1], [0], [0], [1], [0, 0, 1, 1], [], []>} : vector<8x32xf32>, vector<32x128xf32>, vector<8x128xf32> -> vector<8x128xf32>
    %31 = arith.addf %29, %30 : vector<8x128xf32>
    %32 = vector.extract_strided_slice %31 {offsets = [0, 0], sizes = [8, 96], strides = [1, 1]} : vector<8x128xf32> to vector<8x96xf32>
    %33 = arith.negf %32 : vector<8x96xf32>
    %34 = math.exp %33 : vector<8x96xf32>
    %cst_15 = arith.constant 1.000000e+00 : f32
    %35 = vector.broadcast %cst_15 : f32 to vector<8x96xf32>
    %36 = arith.addf %35, %34 : vector<8x96xf32>
    %37 = arith.divf %35, %36 : vector<8x96xf32>
    %38 = vector.extract_strided_slice %31 {offsets = [0, 96], sizes = [8, 32], strides = [1, 1]} : vector<8x128xf32> to vector<8x32xf32>
    %39 = math.tanh %38 : vector<8x32xf32>
    %40 = vector.extract_strided_slice %37 {offsets = [0, 0], sizes = [8, 32], strides = [1, 1]} : vector<8x96xf32> to vector<8x32xf32>
    %41 = vector.extract_strided_slice %37 {offsets = [0, 32], sizes = [8, 32], strides = [1, 1]} : vector<8x96xf32> to vector<8x32xf32>
    %42 = vector.extract_strided_slice %37 {offsets = [0, 64], sizes = [8, 32], strides = [1, 1]} : vector<8x96xf32> to vector<8x32xf32>
    %43 = arith.mulf %41, %24 : vector<8x32xf32>
    %44 = arith.mulf %40, %39 : vector<8x32xf32>
    %45 = arith.addf %43, %44 : vector<8x32xf32>
    %46 = math.tanh %45 : vector<8x32xf32>
    %47 = arith.mulf %42, %46 : vector<8x32xf32>
    %c2_i32 = arith.constant 2 : i32
    %c0_16 = arith.constant 0 : index
    %48 = arith.index_cast %c2_i32 : i32 to index
    %c0_17 = arith.constant 0 : index
    %c0_18 = arith.constant 0 : index
    %49 = vector.load %arg2[%c0_16, %48, %c0_17, %c0_18] : memref<1x8x8x128xf32, #tpu.memory_space<vmem>>, vector<1x1x8x128xf32>
    %50 = vector.shape_cast %49 : vector<1x1x8x128xf32> to vector<8x128xf32>
    %cst_19 = arith.constant dense<0.000000e+00> : vector<8x128xf32>
    %51 = tpu.matmul %47, %3, %cst_19 {dimension_numbers = #tpu.dot_dimension_numbers<[1], [0], [0], [1], [0, 0, 1, 1], [], []>} : vector<8x32xf32>, vector<32x128xf32>, vector<8x128xf32> -> vector<8x128xf32>
    %52 = arith.addf %50, %51 : vector<8x128xf32>
    %53 = vector.extract_strided_slice %52 {offsets = [0, 0], sizes = [8, 96], strides = [1, 1]} : vector<8x128xf32> to vector<8x96xf32>
    %54 = arith.negf %53 : vector<8x96xf32>
    %55 = math.exp %54 : vector<8x96xf32>
    %cst_20 = arith.constant 1.000000e+00 : f32
    %56 = vector.broadcast %cst_20 : f32 to vector<8x96xf32>
    %57 = arith.addf %56, %55 : vector<8x96xf32>
    %58 = arith.divf %56, %57 : vector<8x96xf32>
    %59 = vector.extract_strided_slice %52 {offsets = [0, 96], sizes = [8, 32], strides = [1, 1]} : vector<8x128xf32> to vector<8x32xf32>
    %60 = math.tanh %59 : vector<8x32xf32>
    %61 = vector.extract_strided_slice %58 {offsets = [0, 0], sizes = [8, 32], strides = [1, 1]} : vector<8x96xf32> to vector<8x32xf32>
    %62 = vector.extract_strided_slice %58 {offsets = [0, 32], sizes = [8, 32], strides = [1, 1]} : vector<8x96xf32> to vector<8x32xf32>
    %63 = vector.extract_strided_slice %58 {offsets = [0, 64], sizes = [8, 32], strides = [1, 1]} : vector<8x96xf32> to vector<8x32xf32>
    %64 = arith.mulf %62, %45 : vector<8x32xf32>
    %65 = arith.mulf %61, %60 : vector<8x32xf32>
    %66 = arith.addf %64, %65 : vector<8x32xf32>
    %67 = math.tanh %66 : vector<8x32xf32>
    %68 = arith.mulf %63, %67 : vector<8x32xf32>
    %c3_i32 = arith.constant 3 : i32
    %c0_21 = arith.constant 0 : index
    %69 = arith.index_cast %c3_i32 : i32 to index
    %c0_22 = arith.constant 0 : index
    %c0_23 = arith.constant 0 : index
    %70 = vector.load %arg2[%c0_21, %69, %c0_22, %c0_23] : memref<1x8x8x128xf32, #tpu.memory_space<vmem>>, vector<1x1x8x128xf32>
    %71 = vector.shape_cast %70 : vector<1x1x8x128xf32> to vector<8x128xf32>
    %cst_24 = arith.constant dense<0.000000e+00> : vector<8x128xf32>
    %72 = tpu.matmul %68, %3, %cst_24 {dimension_numbers = #tpu.dot_dimension_numbers<[1], [0], [0], [1], [0, 0, 1, 1], [], []>} : vector<8x32xf32>, vector<32x128xf32>, vector<8x128xf32> -> vector<8x128xf32>
    %73 = arith.addf %71, %72 : vector<8x128xf32>
    %74 = vector.extract_strided_slice %73 {offsets = [0, 0], sizes = [8, 96], strides = [1, 1]} : vector<8x128xf32> to vector<8x96xf32>
    %75 = arith.negf %74 : vector<8x96xf32>
    %76 = math.exp %75 : vector<8x96xf32>
    %cst_25 = arith.constant 1.000000e+00 : f32
    %77 = vector.broadcast %cst_25 : f32 to vector<8x96xf32>
    %78 = arith.addf %77, %76 : vector<8x96xf32>
    %79 = arith.divf %77, %78 : vector<8x96xf32>
    %80 = vector.extract_strided_slice %73 {offsets = [0, 96], sizes = [8, 32], strides = [1, 1]} : vector<8x128xf32> to vector<8x32xf32>
    %81 = math.tanh %80 : vector<8x32xf32>
    %82 = vector.extract_strided_slice %79 {offsets = [0, 0], sizes = [8, 32], strides = [1, 1]} : vector<8x96xf32> to vector<8x32xf32>
    %83 = vector.extract_strided_slice %79 {offsets = [0, 32], sizes = [8, 32], strides = [1, 1]} : vector<8x96xf32> to vector<8x32xf32>
    %84 = vector.extract_strided_slice %79 {offsets = [0, 64], sizes = [8, 32], strides = [1, 1]} : vector<8x96xf32> to vector<8x32xf32>
    %85 = arith.mulf %83, %66 : vector<8x32xf32>
    %86 = arith.mulf %82, %81 : vector<8x32xf32>
    %87 = arith.addf %85, %86 : vector<8x32xf32>
    %88 = math.tanh %87 : vector<8x32xf32>
    %89 = arith.mulf %84, %88 : vector<8x32xf32>
    %c4_i32 = arith.constant 4 : i32
    %c0_26 = arith.constant 0 : index
    %90 = arith.index_cast %c4_i32 : i32 to index
    %c0_27 = arith.constant 0 : index
    %c0_28 = arith.constant 0 : index
    %91 = vector.load %arg2[%c0_26, %90, %c0_27, %c0_28] : memref<1x8x8x128xf32, #tpu.memory_space<vmem>>, vector<1x1x8x128xf32>
    %92 = vector.shape_cast %91 : vector<1x1x8x128xf32> to vector<8x128xf32>
    %cst_29 = arith.constant dense<0.000000e+00> : vector<8x128xf32>
    %93 = tpu.matmul %89, %3, %cst_29 {dimension_numbers = #tpu.dot_dimension_numbers<[1], [0], [0], [1], [0, 0, 1, 1], [], []>} : vector<8x32xf32>, vector<32x128xf32>, vector<8x128xf32> -> vector<8x128xf32>
    %94 = arith.addf %92, %93 : vector<8x128xf32>
    %95 = vector.extract_strided_slice %94 {offsets = [0, 0], sizes = [8, 96], strides = [1, 1]} : vector<8x128xf32> to vector<8x96xf32>
    %96 = arith.negf %95 : vector<8x96xf32>
    %97 = math.exp %96 : vector<8x96xf32>
    %cst_30 = arith.constant 1.000000e+00 : f32
    %98 = vector.broadcast %cst_30 : f32 to vector<8x96xf32>
    %99 = arith.addf %98, %97 : vector<8x96xf32>
    %100 = arith.divf %98, %99 : vector<8x96xf32>
    %101 = vector.extract_strided_slice %94 {offsets = [0, 96], sizes = [8, 32], strides = [1, 1]} : vector<8x128xf32> to vector<8x32xf32>
    %102 = math.tanh %101 : vector<8x32xf32>
    %103 = vector.extract_strided_slice %100 {offsets = [0, 0], sizes = [8, 32], strides = [1, 1]} : vector<8x96xf32> to vector<8x32xf32>
    %104 = vector.extract_strided_slice %100 {offsets = [0, 32], sizes = [8, 32], strides = [1, 1]} : vector<8x96xf32> to vector<8x32xf32>
    %105 = vector.extract_strided_slice %100 {offsets = [0, 64], sizes = [8, 32], strides = [1, 1]} : vector<8x96xf32> to vector<8x32xf32>
    %106 = arith.mulf %104, %87 : vector<8x32xf32>
    %107 = arith.mulf %103, %102 : vector<8x32xf32>
    %108 = arith.addf %106, %107 : vector<8x32xf32>
    %109 = math.tanh %108 : vector<8x32xf32>
    %110 = arith.mulf %105, %109 : vector<8x32xf32>
    %c5_i32 = arith.constant 5 : i32
    %c0_31 = arith.constant 0 : index
    %111 = arith.index_cast %c5_i32 : i32 to index
    %c0_32 = arith.constant 0 : index
    %c0_33 = arith.constant 0 : index
    %112 = vector.load %arg2[%c0_31, %111, %c0_32, %c0_33] : memref<1x8x8x128xf32, #tpu.memory_space<vmem>>, vector<1x1x8x128xf32>
    %113 = vector.shape_cast %112 : vector<1x1x8x128xf32> to vector<8x128xf32>
    %cst_34 = arith.constant dense<0.000000e+00> : vector<8x128xf32>
    %114 = tpu.matmul %110, %3, %cst_34 {dimension_numbers = #tpu.dot_dimension_numbers<[1], [0], [0], [1], [0, 0, 1, 1], [], []>} : vector<8x32xf32>, vector<32x128xf32>, vector<8x128xf32> -> vector<8x128xf32>
    %115 = arith.addf %113, %114 : vector<8x128xf32>
    %116 = vector.extract_strided_slice %115 {offsets = [0, 0], sizes = [8, 96], strides = [1, 1]} : vector<8x128xf32> to vector<8x96xf32>
    %117 = arith.negf %116 : vector<8x96xf32>
    %118 = math.exp %117 : vector<8x96xf32>
    %cst_35 = arith.constant 1.000000e+00 : f32
    %119 = vector.broadcast %cst_35 : f32 to vector<8x96xf32>
    %120 = arith.addf %119, %118 : vector<8x96xf32>
    %121 = arith.divf %119, %120 : vector<8x96xf32>
    %122 = vector.extract_strided_slice %115 {offsets = [0, 96], sizes = [8, 32], strides = [1, 1]} : vector<8x128xf32> to vector<8x32xf32>
    %123 = math.tanh %122 : vector<8x32xf32>
    %124 = vector.extract_strided_slice %121 {offsets = [0, 0], sizes = [8, 32], strides = [1, 1]} : vector<8x96xf32> to vector<8x32xf32>
    %125 = vector.extract_strided_slice %121 {offsets = [0, 32], sizes = [8, 32], strides = [1, 1]} : vector<8x96xf32> to vector<8x32xf32>
    %126 = vector.extract_strided_slice %121 {offsets = [0, 64], sizes = [8, 32], strides = [1, 1]} : vector<8x96xf32> to vector<8x32xf32>
    %127 = arith.mulf %125, %108 : vector<8x32xf32>
    %128 = arith.mulf %124, %123 : vector<8x32xf32>
    %129 = arith.addf %127, %128 : vector<8x32xf32>
    %130 = math.tanh %129 : vector<8x32xf32>
    %131 = arith.mulf %126, %130 : vector<8x32xf32>
    %c6_i32 = arith.constant 6 : i32
    %c0_36 = arith.constant 0 : index
    %132 = arith.index_cast %c6_i32 : i32 to index
    %c0_37 = arith.constant 0 : index
    %c0_38 = arith.constant 0 : index
    %133 = vector.load %arg2[%c0_36, %132, %c0_37, %c0_38] : memref<1x8x8x128xf32, #tpu.memory_space<vmem>>, vector<1x1x8x128xf32>
    %134 = vector.shape_cast %133 : vector<1x1x8x128xf32> to vector<8x128xf32>
    %cst_39 = arith.constant dense<0.000000e+00> : vector<8x128xf32>
    %135 = tpu.matmul %131, %3, %cst_39 {dimension_numbers = #tpu.dot_dimension_numbers<[1], [0], [0], [1], [0, 0, 1, 1], [], []>} : vector<8x32xf32>, vector<32x128xf32>, vector<8x128xf32> -> vector<8x128xf32>
    %136 = arith.addf %134, %135 : vector<8x128xf32>
    %137 = vector.extract_strided_slice %136 {offsets = [0, 0], sizes = [8, 96], strides = [1, 1]} : vector<8x128xf32> to vector<8x96xf32>
    %138 = arith.negf %137 : vector<8x96xf32>
    %139 = math.exp %138 : vector<8x96xf32>
    %cst_40 = arith.constant 1.000000e+00 : f32
    %140 = vector.broadcast %cst_40 : f32 to vector<8x96xf32>
    %141 = arith.addf %140, %139 : vector<8x96xf32>
    %142 = arith.divf %140, %141 : vector<8x96xf32>
    %143 = vector.extract_strided_slice %136 {offsets = [0, 96], sizes = [8, 32], strides = [1, 1]} : vector<8x128xf32> to vector<8x32xf32>
    %144 = math.tanh %143 : vector<8x32xf32>
    %145 = vector.extract_strided_slice %142 {offsets = [0, 0], sizes = [8, 32], strides = [1, 1]} : vector<8x96xf32> to vector<8x32xf32>
    %146 = vector.extract_strided_slice %142 {offsets = [0, 32], sizes = [8, 32], strides = [1, 1]} : vector<8x96xf32> to vector<8x32xf32>
    %147 = vector.extract_strided_slice %142 {offsets = [0, 64], sizes = [8, 32], strides = [1, 1]} : vector<8x96xf32> to vector<8x32xf32>
    %148 = arith.mulf %146, %129 : vector<8x32xf32>
    %149 = arith.mulf %145, %144 : vector<8x32xf32>
    %150 = arith.addf %148, %149 : vector<8x32xf32>
    %151 = math.tanh %150 : vector<8x32xf32>
    %152 = arith.mulf %147, %151 : vector<8x32xf32>
    %c7_i32 = arith.constant 7 : i32
    %c0_41 = arith.constant 0 : index
    %153 = arith.index_cast %c7_i32 : i32 to index
    %c0_42 = arith.constant 0 : index
    %c0_43 = arith.constant 0 : index
    %154 = vector.load %arg2[%c0_41, %153, %c0_42, %c0_43] : memref<1x8x8x128xf32, #tpu.memory_space<vmem>>, vector<1x1x8x128xf32>
    %155 = vector.shape_cast %154 : vector<1x1x8x128xf32> to vector<8x128xf32>
    %cst_44 = arith.constant dense<0.000000e+00> : vector<8x128xf32>
    %156 = tpu.matmul %152, %3, %cst_44 {dimension_numbers = #tpu.dot_dimension_numbers<[1], [0], [0], [1], [0, 0, 1, 1], [], []>} : vector<8x32xf32>, vector<32x128xf32>, vector<8x128xf32> -> vector<8x128xf32>
    %157 = arith.addf %155, %156 : vector<8x128xf32>
    %158 = vector.extract_strided_slice %157 {offsets = [0, 0], sizes = [8, 96], strides = [1, 1]} : vector<8x128xf32> to vector<8x96xf32>
    %159 = arith.negf %158 : vector<8x96xf32>
    %160 = math.exp %159 : vector<8x96xf32>
    %cst_45 = arith.constant 1.000000e+00 : f32
    %161 = vector.broadcast %cst_45 : f32 to vector<8x96xf32>
    %162 = arith.addf %161, %160 : vector<8x96xf32>
    %163 = arith.divf %161, %162 : vector<8x96xf32>
    %164 = vector.extract_strided_slice %157 {offsets = [0, 96], sizes = [8, 32], strides = [1, 1]} : vector<8x128xf32> to vector<8x32xf32>
    %165 = math.tanh %164 : vector<8x32xf32>
    %166 = vector.extract_strided_slice %163 {offsets = [0, 0], sizes = [8, 32], strides = [1, 1]} : vector<8x96xf32> to vector<8x32xf32>
    %167 = vector.extract_strided_slice %163 {offsets = [0, 32], sizes = [8, 32], strides = [1, 1]} : vector<8x96xf32> to vector<8x32xf32>
    %168 = vector.extract_strided_slice %163 {offsets = [0, 64], sizes = [8, 32], strides = [1, 1]} : vector<8x96xf32> to vector<8x32xf32>
    %169 = arith.mulf %167, %150 : vector<8x32xf32>
    %170 = arith.mulf %166, %165 : vector<8x32xf32>
    %171 = arith.addf %169, %170 : vector<8x32xf32>
    %172 = math.tanh %171 : vector<8x32xf32>
    %173 = arith.mulf %168, %172 : vector<8x32xf32>
    %c8_i32 = arith.constant 8 : i32
    %c0_46 = arith.constant 0 : index
    %c0_47 = arith.constant 0 : index
    %174 = vector.load %arg8[%c0_46, %c0_47] : memref<8x32xf32, #tpu.memory_space<vmem>>, vector<8x32xf32>
    tpu.vector_store %arg8[%c0_46, %c0_47], %173 {strides = array<i32>} : memref<8x32xf32, #tpu.memory_space<vmem>>, vector<8x32xf32>,
    %c0_48 = arith.constant 0 : index
    %c0_49 = arith.constant 0 : index
    %175 = vector.load %arg9[%c0_48, %c0_49] : memref<8x32xf32, #tpu.memory_space<vmem>>, vector<8x32xf32>
    tpu.vector_store %arg9[%c0_48, %c0_49], %171 {strides = array<i32>} : memref<8x32xf32, #tpu.memory_space<vmem>>, vector<8x32xf32>,
    %c0_i32_50 = arith.constant 0 : i32
    %176 = arith.cmpi eq, %arg1, %c0_i32_50 : i32
    %177 = arith.extui %176 : i1 to i32
    %c0_i32_51 = arith.constant 0 : i32
    %178 = arith.cmpi ne, %177, %c0_i32_51 : i32
    scf.if %178 {
      %cst_52 = arith.constant dense<0.000000e+00> : vector<8xf32>
      %179 = vector.multi_reduction <add>, %173, %cst_52 [1] : vector<8x32xf32> to vector<8xf32>
      %180 = vector.shape_cast %179 : vector<8xf32> to vector<8x1xf32>
      %cst_53 = arith.constant 3.200000e+01 : f32
      %181 = vector.broadcast %cst_53 : f32 to vector<8x1xf32>
      %182 = arith.divf %180, %181 : vector<8x1xf32>
      %183 = vector.broadcast %182 : vector<8x1xf32> to vector<8x32xf32>
      %184 = arith.subf %173, %183 : vector<8x32xf32>
      %185 = arith.mulf %184, %184 : vector<8x32xf32>
      %cst_54 = arith.constant dense<0.000000e+00> : vector<8xf32>
      %186 = vector.multi_reduction <add>, %185, %cst_54 [1] : vector<8x32xf32> to vector<8xf32>
      %187 = vector.shape_cast %186 : vector<8xf32> to vector<8x1xf32>
      %cst_55 = arith.constant 3.200000e+01 : f32
      %188 = vector.broadcast %cst_55 : f32 to vector<8x1xf32>
      %189 = arith.divf %187, %188 : vector<8x1xf32>
      %190 = vector.broadcast %182 : vector<8x1xf32> to vector<8x32xf32>
      %191 = arith.subf %173, %190 : vector<8x32xf32>
      %cst_56 = arith.constant 9.99999974E-6 : f32
      %192 = vector.broadcast %cst_56 : f32 to vector<8x1xf32>
      %193 = arith.addf %189, %192 : vector<8x1xf32>
      %194 = math.rsqrt %193 : vector<8x1xf32>
      %195 = vector.broadcast %194 : vector<8x1xf32> to vector<8x32xf32>
      %196 = arith.mulf %191, %195 : vector<8x32xf32>
      %c0_57 = arith.constant 0 : index
      %c0_58 = arith.constant 0 : index
      %197 = vector.load %arg4[%c0_57, %c0_58] : memref<1x32xf32, #tpu.memory_space<vmem>>, vector<1x32xf32>
      %198 = vector.broadcast %197 : vector<1x32xf32> to vector<8x32xf32>
      %199 = arith.mulf %196, %198 : vector<8x32xf32>
      %c0_59 = arith.constant 0 : index
      %c0_60 = arith.constant 0 : index
      %200 = vector.load %arg5[%c0_59, %c0_60] : memref<1x32xf32, #tpu.memory_space<vmem>>, vector<1x32xf32>
      %201 = vector.broadcast %200 : vector<1x32xf32> to vector<8x32xf32>
      %202 = arith.addf %199, %201 : vector<8x32xf32>
      %c0_61 = arith.constant 0 : index
      %c0_62 = arith.constant 0 : index
      %203 = vector.load %arg6[%c0_61, %c0_62] : memref<8x32xf32, #tpu.memory_space<vmem>>, vector<8x32xf32>
      tpu.vector_store %arg6[%c0_61, %c0_62], %202 {strides = array<i32>} : memref<8x32xf32, #tpu.memory_space<vmem>>, vector<8x32xf32>,
    } else {
    }
    return
  }
  func.func @transform_0(%arg0: i32, %arg1: i32) -> (i32, i32, i32, i32) {
    %c0_i32 = arith.constant 0 : i32
    %c0_i32_0 = arith.constant 0 : i32
    %c0_i32_1 = arith.constant 0 : i32
    return %arg0, %arg1, %c0_i32, %c0_i32_0 : i32, i32, i32, i32
  }
  func.func @transform_2(%arg0: i32, %arg1: i32) -> (i32, i32) {
    %c0_i32 = arith.constant 0 : i32
    %c0_i32_0 = arith.constant 0 : i32
    %c0_i32_1 = arith.constant 0 : i32
    return %c0_i32, %c0_i32_0 : i32, i32
  }
  func.func @transform_3(%arg0: i32, %arg1: i32) -> (i32, i32) {
    %c0_i32 = arith.constant 0 : i32
    %c0_i32_0 = arith.constant 0 : i32
    %c0_i32_1 = arith.constant 0 : i32
    return %c0_i32, %c0_i32_0 : i32, i32
  }
  func.func @transform_4(%arg0: i32, %arg1: i32) -> (i32, i32) {
    %c0_i32 = arith.constant 0 : i32
    %c0_i32_0 = arith.constant 0 : i32
    return %arg0, %c0_i32 : i32, i32
  }
}

</mosaic_0001>

<llo_original>
// kernel: tpu_custom_call.1
$region0: #{tpu_custom_call.1}
  #allocation0 [shape = 'u32[]', space=smem, size = 0x4, offset = 0x4, fixed_abs, tag = 'smem constant byte address 0x4 - core index']
  #allocation1 [shape = 'u32[144,128]{1,0:T(1,128)}', space=vmem, size = 0x12000, scoped, tag = 'internal scratch']
  #allocation2 [shape = 'f32[32,128]{1,0:T(8,128)}', space=vmem, size = 0x4000, scoped, tag = 'scratch operand']
  #allocation3 [shape = 'f32[8,32]{1,0:T(8,128)}', space=vmem, size = 0x1000, scoped, tag = 'scratch operand']
  #allocation4 [shape = 'f32[8,32]{1,0:T(8,128)}', space=vmem, size = 0x1000, scoped, tag = 'scratch operand']
  #allocation5 [shape = 's32[1]{0}', space=sflag, size = 0x4, scoped, tag = 'scratch operand']
  #allocation13 [shape = 's32[]', space=sflag, size = 0x4, offset = 0, fixed_abs, tag = 'sflag constant byte address 0x0 - dummy sync flag']
  #allocation14 [shape = 's32[]', space=sflag, size = 0x4, offset = 0, fixed_abs, tag = 'sflag constant byte address 0x0 - dummy sync flag']
  #allocation15 [shape = 'u32[]', space=smem, size = 0x4, offset = 0x44, fixed_abs, tag = 'smem constant byte address 0x44 - assertion arg 0']
  #allocation16 [shape = 'u32[]', space=smem, size = 0x4, offset = 0x48, fixed_abs, tag = 'smem constant byte address 0x48 - assertion arg 1']
  %s0 = inlined_call_operand.hbm [shape: f32[1,8,8,128], index: 0, kind: input, shape index: {}]
  %s1 = inlined_call_operand.hbm [shape: f32[32,128], index: 1, kind: input, shape index: {}]
  %s2 = inlined_call_operand.hbm [shape: f32[1,32], index: 2, kind: input, shape index: {}]
  %s3 = inlined_call_operand.hbm [shape: f32[1,32], index: 3, kind: input, shape index: {}]
  %s4 = inlined_call_operand.hbm [shape: f32[8,32], index: 4, kind: output, shape index: {}]
  %s5 = sld [smem:[#allocation0]]
  $region46: #{tpu_custom_call.1} parent=0
    _
  %s7 = ssub.s32 1, %s5
  %s8 = scalar_select 0, %s7, %s5
  $region1: #{tpu_custom_call.1} parent=0
    #allocation6 [shape = 'u8[32768]{0}', space=vmem, size = 0x8000, scoped, tag = 'input window, operand 0, single buffered']
    #allocation7 [shape = 's32[1]{0}', space=sflag, size = 0x4, scoped, tag = 'scoped memory for tpu_custom_call.1']
    #allocation8 [shape = 's32[1]{0}', space=sflag, size = 0x4, scoped, tag = 'scoped memory for tpu_custom_call.1']
    #allocation9 [shape = 'u8[512]{0}', space=vmem, size = 0x400, scoped, tag = 'input window, operand 2, single buffered']
    #allocation10 [shape = 's32[1]{0}', space=sflag, size = 0x4, scoped, tag = 'scoped memory for tpu_custom_call.1']
    #allocation11 [shape = 'u8[512]{0}', space=vmem, size = 0x400, scoped, tag = 'input window, operand 3, single buffered']
    #allocation12 [shape = 'u8[4096]{0}', space=vmem, size = 0x1000, scoped, tag = 'output window, operand 0, single buffered']
    %9 = vsyncpa [#allocation7], 0
    %10 = vsyncpa [#allocation10], 0
    %11 = vsyncpa [#allocation8], 0
    // Predicated region
    $region2: #{tpu_custom_call.1} parent=1 // pred_check
      _
    $region3: #{tpu_custom_call.1} parent=1 // pred_check_branch
      %13 = sbr.rel (0) target = $region5
    $region4: #{tpu_custom_call.1} parent=1 // pred_region
      %s15 = ssub.s32 1024, 1024
      %16 = vsyncadd [#allocation7], %s15
      %s17 = sshll.u32 [#allocation6], 4
      %s18 = int_to_ptr.vmem [resolvable:$true] %s17
      %23 = dma.hbm_to_vmem [thread:$0]  %s0, 1024, %s18, [#allocation7], 128, 128, 8
    $region5: #{tpu_custom_call.1} parent=1 // pred_fallthru
      _
    // Predicated region
    $region6: #{tpu_custom_call.1} parent=1 // pred_check
      _
    $region7: #{tpu_custom_call.1} parent=1 // pred_check_branch
      %25 = sbr.rel (0) target = $region9
    $region8: #{tpu_custom_call.1} parent=1 // pred_region
      %s27 = ssub.s32 16, 16
      %28 = vsyncadd [#allocation10], %s27
      %s30 = sshll.u32 [#allocation9], 4
      %s31 = int_to_ptr.vmem [resolvable:$true] %s30
      %33 = dma.hbm_to_vmem [thread:$0]  %s2, 16, %s31, [#allocation10]
    $region9: #{tpu_custom_call.1} parent=1 // pred_fallthru
      _
    // Predicated region
    $region10: #{tpu_custom_call.1} parent=1 // pred_check
      _
    $region11: #{tpu_custom_call.1} parent=1 // pred_check_branch
      %35 = sbr.rel (0) target = $region13
    $region12: #{tpu_custom_call.1} parent=1 // pred_region
      %s37 = ssub.s32 16, 16
      %38 = vsyncadd [#allocation10], %s37
      %s40 = sshll.u32 [#allocation11], 4
      %s41 = int_to_ptr.vmem [resolvable:$true] %s40
      %43 = dma.hbm_to_vmem [thread:$0]  %s3, 16, %s41, [#allocation10]
    $region13: #{tpu_custom_call.1} parent=1 // pred_fallthru
      _
    // Predicated region
    $region14: #{tpu_custom_call.1} parent=1 // pred_check
      _
    $region15: #{tpu_custom_call.1} parent=1 // pred_check_branch
      %45 = sbr.rel (0) target = $region17
    $region16: #{tpu_custom_call.1} parent=1 // pred_region
      %46 = dma.done [#allocation7], 1024
    $region17: #{tpu_custom_call.1} parent=1 // pred_fallthru
      _
    // Predicated region
    $region18: #{tpu_custom_call.1} parent=1 // pred_check
      _
    $region19: #{tpu_custom_call.1} parent=1 // pred_check_branch
      %48 = sbr.rel (0) target = $region21
    $region20: #{tpu_custom_call.1} parent=1 // pred_region
      %49 = dma.done [#allocation10], 16
    $region21: #{tpu_custom_call.1} parent=1 // pred_fallthru
      _
    // Predicated region
    $region22: #{tpu_custom_call.1} parent=1 // pred_check
      _
    $region23: #{tpu_custom_call.1} parent=1 // pred_check_branch
      %51 = sbr.rel (0) target = $region25
    $region24: #{tpu_custom_call.1} parent=1 // pred_region
      %52 = dma.done [#allocation10], 16
    $region25: #{tpu_custom_call.1} parent=1 // pred_fallthru
      _
    %p53 = scmp.eq.s32.totalorder 0, 0
    // Predicated region
    $region26: #{tpu_custom_call.1} parent=1 // pred_check
      %p54 = pneg %p53
    $region27: #{tpu_custom_call.1} parent=1 // pred_check_branch
      %56 = sbr.rel (%p54) target = $region29
    $region28: #{tpu_custom_call.1} parent=1 // pred_region
      // Predicated region
      $region30: #{tpu_custom_call.1} parent=28 // pred_check
        _
      $region31: #{tpu_custom_call.1} parent=28 // pred_check_branch
        %58 = sbr.rel target = $region33
      $region32: #{tpu_custom_call.1} parent=28 // pred_region
        %59 = sst [smem:[#allocation15]] [#allocation14]
        %60 = sst [smem:[#allocation16]] [#allocation13]
      $region33: #{tpu_custom_call.1} parent=28 // pred_fallthru
        _
      %62 = shalt.err (0)
      %s64 = sshll.u32 [#allocation2], 4
      %s65 = int_to_ptr.vmem [resolvable:$true] %s64
      %67 = dma.hbm_to_vmem [thread:$0]  %s1, 512, %s65, [#allocation5]
      %s68 = smul.u32 32, 1
      %s69 = sshll.u32 %s68, 4
      %70 = dma.done [#allocation5], %s69
      %vm71 = vcmask 261120
      %72 = vst.msk [vmem:[#allocation3] sm:$0xff] %vm71, 0.0
      %73 = vst.msk [vmem:[#allocation4] sm:$0xff] %vm71, 0.0
    $region29: #{tpu_custom_call.1} parent=1 // pred_fallthru
      _
    %v74 = vld [vmem:[#allocation2] sm:$0xff]
    %v75 = vld [vmem:[#allocation2 + $0x8] sm:$0xff]
    %v76 = vld [vmem:[#allocation2 + $0x10] sm:$0xff]
    %v77 = vld [vmem:[#allocation2 + $0x18] sm:$0xff]
    %v78 = vld [vmem:[#allocation3] sm:$0xff]
    %v79 = vld [vmem:[#allocation4] sm:$0xff]
    %v80 = vld [vmem:[#allocation6] sm:$0xff]
    %vm81 = vcmask 261120
    %v83 = vsel %vm81, %v78, 0
    %85 = vmatprep.subr.mxu0 0.0
    %86 = vmatpush1.msra.mxu0 %v74
    %87 = vmatprep.subr.mxu0 0.0
    %88 = vmatpush1.msra.mxu0 %v75
    %89 = vmatprep.subr.mxu0 0.0
    %90 = vmatpush1.msra.mxu0 %v76
    %91 = vmatprep.subr.mxu0 0.0
    %92 = vmatpush1.msra.mxu0 %v77
    %93 = vmatprep.subr.mxu0 0.0
    %94 = vmatpush1.msra.mxu0 0.0
    %95 = vmatprep.subr.mxu0 0.0
    %96 = vmatpush1.msra.mxu0 0.0
    %97 = vmatprep.subr.mxu0 0.0
    %98 = vmatpush1.msra.mxu0 0.0
    %99 = vmatprep.subr.mxu0 0.0
    %100 = vmatpush1.msra.mxu0 0.0
    %101 = vmatprep.subr.mxu0 0.0
    %102 = vmatpush1.msra.mxu0 0.0
    %103 = vmatprep.subr.mxu0 0.0
    %104 = vmatpush1.msra.mxu0 0.0
    %105 = vmatprep.subr.mxu0 0.0
    %106 = vmatpush1.msra.mxu0 0.0
    %107 = vmatprep.subr.mxu0 0.0
    %108 = vmatpush1.msra.mxu0 0.0
    %109 = vmatprep.subr.mxu0 0.0
    %110 = vmatpush1.msra.mxu0 0.0
    %111 = vmatprep.subr.mxu0 0.0
    %112 = vmatpush1.msra.mxu0 0.0
    %113 = vmatprep.subr.mxu0 0.0
    %114 = vmatpush1.msra.mxu0 0.0
    %115 = vmatprep.subr.mxu0 0.0
    %116 = vmatpush1.msra.mxu0 0.0
    %117 = vmatprep.subr.mxu0 0.0
    %118 = vmatpush1.msra.mxu0 0.0
    %119 = vmatprep.subr.mxu0 0.0
    %120 = vmatpush1.msra.mxu0 0.0
    %121 = vmatprep.subr.mxu0 0.0
    %122 = vmatpush1.msra.mxu0 0.0
    %123 = vmatprep.subr.mxu0 0.0
    %124 = vmatpush1.msra.mxu0 0.0
    %125 = vmatprep.subr.mxu0 0.0
    %126 = vmatpush1.msra.mxu0 0.0
    %127 = vmatprep.subr.mxu0 0.0
    %128 = vmatpush1.msra.mxu0 0.0
    %129 = vmatprep.subr.mxu0 0.0
    %130 = vmatpush1.msra.mxu0 0.0
    %131 = vmatprep.subr.mxu0 0.0
    %132 = vmatpush1.msra.mxu0 0.0
    %133 = vmatprep.subr.mxu0 0.0
    %134 = vmatpush1.msra.mxu0 0.0
    %135 = vmatprep.subr.mxu0 0.0
    %136 = vmatpush1.msra.mxu0 0.0
    %137 = vmatprep.subr.mxu0 0.0
    %138 = vmatpush1.msra.mxu0 0.0
    %139 = vmatprep.subr.mxu0 0.0
    %140 = vmatpush1.msra.mxu0 0.0
    %141 = vmatprep.subr.mxu0 0.0
    %142 = vmatpush1.msra.mxu0 0.0
    %143 = vmatprep.subr.mxu0 0.0
    %144 = vmatpush1.msra.mxu0 0.0
    %145 = vmatprep.subr.mxu0 0.0
    %146 = vmatpush1.msra.mxu0 0.0
    %147 = vmatprep.subr.mxu0 0.0
    %148 = vmatpush1.msra.mxu0 0.0
    %149 = vmatprep.mubr.f32.mxu0 0.0
    %150 = vmatmul.mubr.f32.gmra.mrb[0].mxu0 %v83
    %v151 = vpop.f32.mrb[0].mxu0
    %v152 = vadd.f32 0.0, %v151
    %v153 = vpop.f32.mrb[0].mxu0
    %154 = vdwg.mxu0
    %v155 = vadd.f32 %v80, %v152
    %v156 = vxor.u32 %v155, 2147483648
    %v157 = vmul.f32 %v156, 1.442695
    %v158 = vpow.pop %v157
    %v159 = vadd.f32 %v158, 1.0
    %v160 = vrcp.pop %v159
    %v161 = vmul.f32 1.0, %v160
    %v162 = vtanh.pop %v155
    %164 = vrot.lane.b32.xlu0 %v79, 32
    %v165 = vpop.permute.xlu0 %164
    %v167 = vmul.f32 %v161, %v165
    %169 = vrot.lane.b32.xlu0 %v162, 32
    %v170 = vpop.permute.xlu0 %169
    %v172 = vmul.f32 %v161, %v170
    %174 = vrot.lane.b32.xlu0 %v172, 32
    %v175 = vpop.permute.xlu0 %174
    %v177 = vadd.f32 %v167, %v175
    %v178 = vtanh.pop %v177
    %180 = vrot.lane.b32.xlu0 %v178, 32
    %v181 = vpop.permute.xlu0 %180
    %v183 = vmul.f32 %v161, %v181
    %s184 = scalar_lea.vmem [#allocation6], 8
    %v185 = vld [vmem:[%s184] sm:$0xff]
    %187 = vrot.lane.b32.xlu0 %v183, 64
    %v188 = vpop.permute.xlu0 %187
    %v189 = vsel %vm81, %v188, 0
    %191 = vmatprep.subr.mxu0 0.0
    %192 = vmatpush1.msra.mxu0 %v74
    %193 = vmatprep.subr.mxu0 0.0
    %194 = vmatpush1.msra.mxu0 %v75
    %195 = vmatprep.subr.mxu0 0.0
    %196 = vmatpush1.msra.mxu0 %v76
    %197 = vmatprep.subr.mxu0 0.0
    %198 = vmatpush1.msra.mxu0 %v77
    %199 = vmatprep.subr.mxu0 0.0
    %200 = vmatpush1.msra.mxu0 0.0
    %201 = vmatprep.subr.mxu0 0.0
    %202 = vmatpush1.msra.mxu0 0.0
    %203 = vmatprep.subr.mxu0 0.0
    %204 = vmatpush1.msra.mxu0 0.0
    %205 = vmatprep.subr.mxu0 0.0
    %206 = vmatpush1.msra.mxu0 0.0
    %207 = vmatprep.subr.mxu0 0.0
    %208 = vmatpush1.msra.mxu0 0.0
    %209 = vmatprep.subr.mxu0 0.0
    %210 = vmatpush1.msra.mxu0 0.0
    %211 = vmatprep.subr.mxu0 0.0
    %212 = vmatpush1.msra.mxu0 0.0
    %213 = vmatprep.subr.mxu0 0.0
    %214 = vmatpush1.msra.mxu0 0.0
    %215 = vmatprep.subr.mxu0 0.0
    %216 = vmatpush1.msra.mxu0 0.0
    %217 = vmatprep.subr.mxu0 0.0
    %218 = vmatpush1.msra.mxu0 0.0
    %219 = vmatprep.subr.mxu0 0.0
    %220 = vmatpush1.msra.mxu0 0.0
    %221 = vmatprep.subr.mxu0 0.0
    %222 = vmatpush1.msra.mxu0 0.0
    %223 = vmatprep.subr.mxu0 0.0
    %224 = vmatpush1.msra.mxu0 0.0
    %225 = vmatprep.subr.mxu0 0.0
    %226 = vmatpush1.msra.mxu0 0.0
    %227 = vmatprep.subr.mxu0 0.0
    %228 = vmatpush1.msra.mxu0 0.0
    %229 = vmatprep.subr.mxu0 0.0
    %230 = vmatpush1.msra.mxu0 0.0
    %231 = vmatprep.subr.mxu0 0.0
    %232 = vmatpush1.msra.mxu0 0.0
    %233 = vmatprep.subr.mxu0 0.0
    %234 = vmatpush1.msra.mxu0 0.0
    %235 = vmatprep.subr.mxu0 0.0
    %236 = vmatpush1.msra.mxu0 0.0
    %237 = vmatprep.subr.mxu0 0.0
    %238 = vmatpush1.msra.mxu0 0.0
    %239 = vmatprep.subr.mxu0 0.0
    %240 = vmatpush1.msra.mxu0 0.0
    %241 = vmatprep.subr.mxu0 0.0
    %242 = vmatpush1.msra.mxu0 0.0
    %243 = vmatprep.subr.mxu0 0.0
    %244 = vmatpush1.msra.mxu0 0.0
    %245 = vmatprep.subr.mxu0 0.0
    %246 = vmatpush1.msra.mxu0 0.0
    %247 = vmatprep.subr.mxu0 0.0
    %248 = vmatpush1.msra.mxu0 0.0
    %249 = vmatprep.subr.mxu0 0.0
    %250 = vmatpush1.msra.mxu0 0.0
    %251 = vmatprep.subr.mxu0 0.0
    %252 = vmatpush1.msra.mxu0 0.0
    %253 = vmatprep.subr.mxu0 0.0
    %254 = vmatpush1.msra.mxu0 0.0
    %255 = vmatprep.mubr.f32.mxu0 0.0
    %256 = vmatmul.mubr.f32.gmra.mrb[0].mxu0 %v189
    %v257 = vpop.f32.mrb[0].mxu0
    %v258 = vadd.f32 0.0, %v257
    %v259 = vpop.f32.mrb[0].mxu0
    %260 = vdwg.mxu0
    %v261 = vadd.f32 %v185, %v258
    %v262 = vxor.u32 %v261, 2147483648
    %v263 = vmul.f32 %v262, 1.442695
    %v264 = vpow.pop %v263
    %v265 = vadd.f32 %v264, 1.0
    %v266 = vrcp.pop %v265
    %v267 = vmul.f32 1.0, %v266
    %v268 = vtanh.pop %v261
    %v269 = vmul.f32 %v267, %v177
    %271 = vrot.lane.b32.xlu0 %v268, 32
    %v272 = vpop.permute.xlu0 %271
    %v274 = vmul.f32 %v267, %v272
    %276 = vrot.lane.b32.xlu0 %v274, 32
    %v277 = vpop.permute.xlu0 %276
    %v279 = vadd.f32 %v269, %v277
    %v280 = vtanh.pop %v279
    %282 = vrot.lane.b32.xlu0 %v280, 32
    %v283 = vpop.permute.xlu0 %282
    %v285 = vmul.f32 %v267, %v283
    %s286 = scalar_lea.vmem [#allocation6], 16
    %v287 = vld [vmem:[%s286] sm:$0xff]
    %289 = vrot.lane.b32.xlu0 %v285, 64
    %v290 = vpop.permute.xlu0 %289
    %v291 = vsel %vm81, %v290, 0
    %293 = vmatprep.subr.mxu0 0.0
    %294 = vmatpush1.msra.mxu0 %v74
    %295 = vmatprep.subr.mxu0 0.0
    %296 = vmatpush1.msra.mxu0 %v75
    %297 = vmatprep.subr.mxu0 0.0
    %298 = vmatpush1.msra.mxu0 %v76
    %299 = vmatprep.subr.mxu0 0.0
    %300 = vmatpush1.msra.mxu0 %v77
    %301 = vmatprep.subr.mxu0 0.0
    %302 = vmatpush1.msra.mxu0 0.0
    %303 = vmatprep.subr.mxu0 0.0
    %304 = vmatpush1.msra.mxu0 0.0
    %305 = vmatprep.subr.mxu0 0.0
    %306 = vmatpush1.msra.mxu0 0.0
    %307 = vmatprep.subr.mxu0 0.0
    %308 = vmatpush1.msra.mxu0 0.0
    %309 = vmatprep.subr.mxu0 0.0
    %310 = vmatpush1.msra.mxu0 0.0
    %311 = vmatprep.subr.mxu0 0.0
    %312 = vmatpush1.msra.mxu0 0.0
    %313 = vmatprep.subr.mxu0 0.0
    %314 = vmatpush1.msra.mxu0 0.0
    %315 = vmatprep.subr.mxu0 0.0
    %316 = vmatpush1.msra.mxu0 0.0
    %317 = vmatprep.subr.mxu0 0.0
    %318 = vmatpush1.msra.mxu0 0.0
    %319 = vmatprep.subr.mxu0 0.0
    %320 = vmatpush1.msra.mxu0 0.0
    %321 = vmatprep.subr.mxu0 0.0
    %322 = vmatpush1.msra.mxu0 0.0
    %323 = vmatprep.subr.mxu0 0.0
    %324 = vmatpush1.msra.mxu0 0.0
    %325 = vmatprep.subr.mxu0 0.0
    %326 = vmatpush1.msra.mxu0 0.0
    %327 = vmatprep.subr.mxu0 0.0
    %328 = vmatpush1.msra.mxu0 0.0
    %329 = vmatprep.subr.mxu0 0.0
    %330 = vmatpush1.msra.mxu0 0.0
    %331 = vmatprep.subr.mxu0 0.0
    %332 = vmatpush1.msra.mxu0 0.0
    %333 = vmatprep.subr.mxu0 0.0
    %334 = vmatpush1.msra.mxu0 0.0
    %335 = vmatprep.subr.mxu0 0.0
    %336 = vmatpush1.msra.mxu0 0.0
    %337 = vmatprep.subr.mxu0 0.0
    %338 = vmatpush1.msra.mxu0 0.0
    %339 = vmatprep.subr.mxu0 0.0
    %340 = vmatpush1.msra.mxu0 0.0
    %341 = vmatprep.subr.mxu0 0.0
    %342 = vmatpush1.msra.mxu0 0.0
    %343 = vmatprep.subr.mxu0 0.0
    %344 = vmatpush1.msra.mxu0 0.0
    %345 = vmatprep.subr.mxu0 0.0
    %346 = vmatpush1.msra.mxu0 0.0
    %347 = vmatprep.subr.mxu0 0.0
    %348 = vmatpush1.msra.mxu0 0.0
    %349 = vmatprep.subr.mxu0 0.0
    %350 = vmatpush1.msra.mxu0 0.0
    %351 = vmatprep.subr.mxu0 0.0
    %352 = vmatpush1.msra.mxu0 0.0
    %353 = vmatprep.subr.mxu0 0.0
    %354 = vmatpush1.msra.mxu0 0.0
    %355 = vmatprep.subr.mxu0 0.0
    %356 = vmatpush1.msra.mxu0 0.0
    %357 = vmatprep.mubr.f32.mxu0 0.0
    %358 = vmatmul.mubr.f32.gmra.mrb[0].mxu0 %v291
    %v359 = vpop.f32.mrb[0].mxu0
    %v360 = vadd.f32 0.0, %v359
    %v361 = vpop.f32.mrb[0].mxu0
    %362 = vdwg.mxu0
    %v363 = vadd.f32 %v287, %v360
    %v364 = vxor.u32 %v363, 2147483648
    %v365 = vmul.f32 %v364, 1.442695
    %v366 = vpow.pop %v365
    %v367 = vadd.f32 %v366, 1.0
    %v368 = vrcp.pop %v367
    %v369 = vmul.f32 1.0, %v368
    %v370 = vtanh.pop %v363
    %v371 = vmul.f32 %v369, %v279
    %373 = vrot.lane.b32.xlu0 %v370, 32
    %v374 = vpop.permute.xlu0 %373
    %v376 = vmul.f32 %v369, %v374
    %378 = vrot.lane.b32.xlu0 %v376, 32
    %v379 = vpop.permute.xlu0 %378
    %v381 = vadd.f32 %v371, %v379
    %v382 = vtanh.pop %v381
    %384 = vrot.lane.b32.xlu0 %v382, 32
    %v385 = vpop.permute.xlu0 %384
    %v387 = vmul.f32 %v369, %v385
    %s388 = scalar_lea.vmem [#allocation6], 24
    %v389 = vld [vmem:[%s388] sm:$0xff]
    %391 = vrot.lane.b32.xlu0 %v387, 64
    %v392 = vpop.permute.xlu0 %391
    %v393 = vsel %vm81, %v392, 0
    %395 = vmatprep.subr.mxu0 0.0
    %396 = vmatpush1.msra.mxu0 %v74
    %397 = vmatprep.subr.mxu0 0.0
    %398 = vmatpush1.msra.mxu0 %v75
    %399 = vmatprep.subr.mxu0 0.0
    %400 = vmatpush1.msra.mxu0 %v76
    %401 = vmatprep.subr.mxu0 0.0
    %402 = vmatpush1.msra.mxu0 %v77
    %403 = vmatprep.subr.mxu0 0.0
    %404 = vmatpush1.msra.mxu0 0.0
    %405 = vmatprep.subr.mxu0 0.0
    %406 = vmatpush1.msra.mxu0 0.0
    %407 = vmatprep.subr.mxu0 0.0
    %408 = vmatpush1.msra.mxu0 0.0
    %409 = vmatprep.subr.mxu0 0.0
    %410 = vmatpush1.msra.mxu0 0.0
    %411 = vmatprep.subr.mxu0 0.0
    %412 = vmatpush1.msra.mxu0 0.0
    %413 = vmatprep.subr.mxu0 0.0
    %414 = vmatpush1.msra.mxu0 0.0
    %415 = vmatprep.subr.mxu0 0.0
    %416 = vmatpush1.msra.mxu0 0.0
    %417 = vmatprep.subr.mxu0 0.0
    %418 = vmatpush1.msra.mxu0 0.0
    %419 = vmatprep.subr.mxu0 0.0
    %420 = vmatpush1.msra.mxu0 0.0
    %421 = vmatprep.subr.mxu0 0.0
    %422 = vmatpush1.msra.mxu0 0.0
    %423 = vmatprep.subr.mxu0 0.0
    %424 = vmatpush1.msra.mxu0 0.0
    %425 = vmatprep.subr.mxu0 0.0
    %426 = vmatpush1.msra.mxu0 0.0
    %427 = vmatprep.subr.mxu0 0.0
    %428 = vmatpush1.msra.mxu0 0.0
    %429 = vmatprep.subr.mxu0 0.0
    %430 = vmatpush1.msra.mxu0 0.0
    %431 = vmatprep.subr.mxu0 0.0
    %432 = vmatpush1.msra.mxu0 0.0
    %433 = vmatprep.subr.mxu0 0.0
    %434 = vmatpush1.msra.mxu0 0.0
    %435 = vmatprep.subr.mxu0 0.0
    %436 = vmatpush1.msra.mxu0 0.0
    %437 = vmatprep.subr.mxu0 0.0
    %438 = vmatpush1.msra.mxu0 0.0
    %439 = vmatprep.subr.mxu0 0.0
    %440 = vmatpush1.msra.mxu0 0.0
    %441 = vmatprep.subr.mxu0 0.0
    %442 = vmatpush1.msra.mxu0 0.0
    %443 = vmatprep.subr.mxu0 0.0
    %444 = vmatpush1.msra.mxu0 0.0
    %445 = vmatprep.subr.mxu0 0.0
    %446 = vmatpush1.msra.mxu0 0.0
    %447 = vmatprep.subr.mxu0 0.0
    %448 = vmatpush1.msra.mxu0 0.0
    %449 = vmatprep.subr.mxu0 0.0
    %450 = vmatpush1.msra.mxu0 0.0
    %451 = vmatprep.subr.mxu0 0.0
    %452 = vmatpush1.msra.mxu0 0.0
    %453 = vmatprep.subr.mxu0 0.0
    %454 = vmatpush1.msra.mxu0 0.0
    %455 = vmatprep.subr.mxu0 0.0
    %456 = vmatpush1.msra.mxu0 0.0
    %457 = vmatprep.subr.mxu0 0.0
    %458 = vmatpush1.msra.mxu0 0.0
    %459 = vmatprep.mubr.f32.mxu0 0.0
    %460 = vmatmul.mubr.f32.gmra.mrb[0].mxu0 %v393
    %v461 = vpop.f32.mrb[0].mxu0
    %v462 = vadd.f32 0.0, %v461
    %v463 = vpop.f32.mrb[0].mxu0
    %464 = vdwg.mxu0
    %v465 = vadd.f32 %v389, %v462
    %v466 = vxor.u32 %v465, 2147483648
    %v467 = vmul.f32 %v466, 1.442695
    %v468 = vpow.pop %v467
    %v469 = vadd.f32 %v468, 1.0
    %v470 = vrcp.pop %v469
    %v471 = vmul.f32 1.0, %v470
    %v472 = vtanh.pop %v465
    %v473 = vmul.f32 %v471, %v381
    %475 = vrot.lane.b32.xlu0 %v472, 32
    %v476 = vpop.permute.xlu0 %475
    %v478 = vmul.f32 %v471, %v476
    %480 = vrot.lane.b32.xlu0 %v478, 32
    %v481 = vpop.permute.xlu0 %480
    %v483 = vadd.f32 %v473, %v481
    %v484 = vtanh.pop %v483
    %486 = vrot.lane.b32.xlu0 %v484, 32
    %v487 = vpop.permute.xlu0 %486
    %v489 = vmul.f32 %v471, %v487
    %s490 = scalar_lea.vmem [#allocation6], 32
    %v491 = vld [vmem:[%s490] sm:$0xff]
    %493 = vrot.lane.b32.xlu0 %v489, 64
    %v494 = vpop.permute.xlu0 %493
    %v495 = vsel %vm81, %v494, 0
    %497 = vmatprep.subr.mxu0 0.0
    %498 = vmatpush1.msra.mxu0 %v74
    %499 = vmatprep.subr.mxu0 0.0
    %500 = vmatpush1.msra.mxu0 %v75
    %501 = vmatprep.subr.mxu0 0.0
    %502 = vmatpush1.msra.mxu0 %v76
    %503 = vmatprep.subr.mxu0 0.0
    %504 = vmatpush1.msra.mxu0 %v77
    %505 = vmatprep.subr.mxu0 0.0
    %506 = vmatpush1.msra.mxu0 0.0
    %507 = vmatprep.subr.mxu0 0.0
    %508 = vmatpush1.msra.mxu0 0.0
    %509 = vmatprep.subr.mxu0 0.0
    %510 = vmatpush1.msra.mxu0 0.0
    %511 = vmatprep.subr.mxu0 0.0
    %512 = vmatpush1.msra.mxu0 0.0
    %513 = vmatprep.subr.mxu0 0.0
    %514 = vmatpush1.msra.mxu0 0.0
    %515 = vmatprep.subr.mxu0 0.0
    %516 = vmatpush1.msra.mxu0 0.0
    %517 = vmatprep.subr.mxu0 0.0
    %518 = vmatpush1.msra.mxu0 0.0
    %519 = vmatprep.subr.mxu0 0.0
    %520 = vmatpush1.msra.mxu0 0.0
    %521 = vmatprep.subr.mxu0 0.0
    %522 = vmatpush1.msra.mxu0 0.0
    %523 = vmatprep.subr.mxu0 0.0
    %524 = vmatpush1.msra.mxu0 0.0
    %525 = vmatprep.subr.mxu0 0.0
    %526 = vmatpush1.msra.mxu0 0.0
    %527 = vmatprep.subr.mxu0 0.0
    %528 = vmatpush1.msra.mxu0 0.0
    %529 = vmatprep.subr.mxu0 0.0
    %530 = vmatpush1.msra.mxu0 0.0
    %531 = vmatprep.subr.mxu0 0.0
    %532 = vmatpush1.msra.mxu0 0.0
    %533 = vmatprep.subr.mxu0 0.0
    %534 = vmatpush1.msra.mxu0 0.0
    %535 = vmatprep.subr.mxu0 0.0
    %536 = vmatpush1.msra.mxu0 0.0
    %537 = vmatprep.subr.mxu0 0.0
    %538 = vmatpush1.msra.mxu0 0.0
    %539 = vmatprep.subr.mxu0 0.0
    %540 = vmatpush1.msra.mxu0 0.0
    %541 = vmatprep.subr.mxu0 0.0
    %542 = vmatpush1.msra.mxu0 0.0
    %543 = vmatprep.subr.mxu0 0.0
    %544 = vmatpush1.msra.mxu0 0.0
    %545 = vmatprep.subr.mxu0 0.0
    %546 = vmatpush1.msra.mxu0 0.0
    %547 = vmatprep.subr.mxu0 0.0
    %548 = vmatpush1.msra.mxu0 0.0
    %549 = vmatprep.subr.mxu0 0.0
    %550 = vmatpush1.msra.mxu0 0.0
    %551 = vmatprep.subr.mxu0 0.0
    %552 = vmatpush1.msra.mxu0 0.0
    %553 = vmatprep.subr.mxu0 0.0
    %554 = vmatpush1.msra.mxu0 0.0
    %555 = vmatprep.subr.mxu0 0.0
    %556 = vmatpush1.msra.mxu0 0.0
    %557 = vmatprep.subr.mxu0 0.0
    %558 = vmatpush1.msra.mxu0 0.0
    %559 = vmatprep.subr.mxu0 0.0
    %560 = vmatpush1.msra.mxu0 0.0
    %561 = vmatprep.mubr.f32.mxu0 0.0
    %562 = vmatmul.mubr.f32.gmra.mrb[0].mxu0 %v495
    %v563 = vpop.f32.mrb[0].mxu0
    %v564 = vadd.f32 0.0, %v563
    %v565 = vpop.f32.mrb[0].mxu0
    %566 = vdwg.mxu0
    %v567 = vadd.f32 %v491, %v564
    %v568 = vxor.u32 %v567, 2147483648
    %v569 = vmul.f32 %v568, 1.442695
    %v570 = vpow.pop %v569
    %v571 = vadd.f32 %v570, 1.0
    %v572 = vrcp.pop %v571
    %v573 = vmul.f32 1.0, %v572
    %v574 = vtanh.pop %v567
    %v575 = vmul.f32 %v573, %v483
    %577 = vrot.lane.b32.xlu0 %v574, 32
    %v578 = vpop.permute.xlu0 %577
    %v580 = vmul.f32 %v573, %v578
    %582 = vrot.lane.b32.xlu0 %v580, 32
    %v583 = vpop.permute.xlu0 %582
    %v585 = vadd.f32 %v575, %v583
    %v586 = vtanh.pop %v585
    %588 = vrot.lane.b32.xlu0 %v586, 32
    %v589 = vpop.permute.xlu0 %588
    %v591 = vmul.f32 %v573, %v589
    %s592 = scalar_lea.vmem [#allocation6], 40
    %v593 = vld [vmem:[%s592] sm:$0xff]
    %595 = vrot.lane.b32.xlu0 %v591, 64
    %v596 = vpop.permute.xlu0 %595
    %v597 = vsel %vm81, %v596, 0
    %599 = vmatprep.subr.mxu0 0.0
    %600 = vmatpush1.msra.mxu0 %v74
    %601 = vmatprep.subr.mxu0 0.0
    %602 = vmatpush1.msra.mxu0 %v75
    %603 = vmatprep.subr.mxu0 0.0
    %604 = vmatpush1.msra.mxu0 %v76
    %605 = vmatprep.subr.mxu0 0.0
    %606 = vmatpush1.msra.mxu0 %v77
    %607 = vmatprep.subr.mxu0 0.0
    %608 = vmatpush1.msra.mxu0 0.0
    %609 = vmatprep.subr.mxu0 0.0
    %610 = vmatpush1.msra.mxu0 0.0
    %611 = vmatprep.subr.mxu0 0.0
    %612 = vmatpush1.msra.mxu0 0.0
    %613 = vmatprep.subr.mxu0 0.0
    %614 = vmatpush1.msra.mxu0 0.0
    %615 = vmatprep.subr.mxu0 0.0
    %616 = vmatpush1.msra.mxu0 0.0
    %617 = vmatprep.subr.mxu0 0.0
    %618 = vmatpush1.msra.mxu0 0.0
    %619 = vmatprep.subr.mxu0 0.0
    %620 = vmatpush1.msra.mxu0 0.0
    %621 = vmatprep.subr.mxu0 0.0
    %622 = vmatpush1.msra.mxu0 0.0
    %623 = vmatprep.subr.mxu0 0.0
    %624 = vmatpush1.msra.mxu0 0.0
    %625 = vmatprep.subr.mxu0 0.0
    %626 = vmatpush1.msra.mxu0 0.0
    %627 = vmatprep.subr.mxu0 0.0
    %628 = vmatpush1.msra.mxu0 0.0
    %629 = vmatprep.subr.mxu0 0.0
    %630 = vmatpush1.msra.mxu0 0.0
    %631 = vmatprep.subr.mxu0 0.0
    %632 = vmatpush1.msra.mxu0 0.0
    %633 = vmatprep.subr.mxu0 0.0
    %634 = vmatpush1.msra.mxu0 0.0
    %635 = vmatprep.subr.mxu0 0.0
    %636 = vmatpush1.msra.mxu0 0.0
    %637 = vmatprep.subr.mxu0 0.0
    %638 = vmatpush1.msra.mxu0 0.0
    %639 = vmatprep.subr.mxu0 0.0
    %640 = vmatpush1.msra.mxu0 0.0
    %641 = vmatprep.subr.mxu0 0.0
    %642 = vmatpush1.msra.mxu0 0.0
    %643 = vmatprep.subr.mxu0 0.0
    %644 = vmatpush1.msra.mxu0 0.0
    %645 = vmatprep.subr.mxu0 0.0
    %646 = vmatpush1.msra.mxu0 0.0
    %647 = vmatprep.subr.mxu0 0.0
    %648 = vmatpush1.msra.mxu0 0.0
    %649 = vmatprep.subr.mxu0 0.0
    %650 = vmatpush1.msra.mxu0 0.0
    %651 = vmatprep.subr.mxu0 0.0
    %652 = vmatpush1.msra.mxu0 0.0
    %653 = vmatprep.subr.mxu0 0.0
    %654 = vmatpush1.msra.mxu0 0.0
    %655 = vmatprep.subr.mxu0 0.0
    %656 = vmatpush1.msra.mxu0 0.0
    %657 = vmatprep.subr.mxu0 0.0
    %658 = vmatpush1.msra.mxu0 0.0
    %659 = vmatprep.subr.mxu0 0.0
    %660 = vmatpush1.msra.mxu0 0.0
    %661 = vmatprep.subr.mxu0 0.0
    %662 = vmatpush1.msra.mxu0 0.0
    %663 = vmatprep.mubr.f32.mxu0 0.0
    %664 = vmatmul.mubr.f32.gmra.mrb[0].mxu0 %v597
    %v665 = vpop.f32.mrb[0].mxu0
    %v666 = vadd.f32 0.0, %v665
    %v667 = vpop.f32.mrb[0].mxu0
    %668 = vdwg.mxu0
    %v669 = vadd.f32 %v593, %v666
    %v670 = vxor.u32 %v669, 2147483648
    %v671 = vmul.f32 %v670, 1.442695
    %v672 = vpow.pop %v671
    %v673 = vadd.f32 %v672, 1.0
    %v674 = vrcp.pop %v673
    %v675 = vmul.f32 1.0, %v674
    %v676 = vtanh.pop %v669
    %v677 = vmul.f32 %v675, %v585
    %679 = vrot.lane.b32.xlu0 %v676, 32
    %v680 = vpop.permute.xlu0 %679
    %v682 = vmul.f32 %v675, %v680
    %684 = vrot.lane.b32.xlu0 %v682, 32
    %v685 = vpop.permute.xlu0 %684
    %v687 = vadd.f32 %v677, %v685
    %v688 = vtanh.pop %v687
    %690 = vrot.lane.b32.xlu0 %v688, 32
    %v691 = vpop.permute.xlu0 %690
    %v693 = vmul.f32 %v675, %v691
    %s694 = scalar_lea.vmem [#allocation6], 48
    %v695 = vld [vmem:[%s694] sm:$0xff]
    %697 = vrot.lane.b32.xlu0 %v693, 64
    %v698 = vpop.permute.xlu0 %697
    %v699 = vsel %vm81, %v698, 0
    %701 = vmatprep.subr.mxu0 0.0
    %702 = vmatpush1.msra.mxu0 %v74
    %703 = vmatprep.subr.mxu0 0.0
    %704 = vmatpush1.msra.mxu0 %v75
    %705 = vmatprep.subr.mxu0 0.0
    %706 = vmatpush1.msra.mxu0 %v76
    %707 = vmatprep.subr.mxu0 0.0
    %708 = vmatpush1.msra.mxu0 %v77
    %709 = vmatprep.subr.mxu0 0.0
    %710 = vmatpush1.msra.mxu0 0.0
    %711 = vmatprep.subr.mxu0 0.0
    %712 = vmatpush1.msra.mxu0 0.0
    %713 = vmatprep.subr.mxu0 0.0
    %714 = vmatpush1.msra.mxu0 0.0
    %715 = vmatprep.subr.mxu0 0.0
    %716 = vmatpush1.msra.mxu0 0.0
    %717 = vmatprep.subr.mxu0 0.0
    %718 = vmatpush1.msra.mxu0 0.0
    %719 = vmatprep.subr.mxu0 0.0
    %720 = vmatpush1.msra.mxu0 0.0
    %721 = vmatprep.subr.mxu0 0.0
    %722 = vmatpush1.msra.mxu0 0.0
    %723 = vmatprep.subr.mxu0 0.0
    %724 = vmatpush1.msra.mxu0 0.0
    %725 = vmatprep.subr.mxu0 0.0
    %726 = vmatpush1.msra.mxu0 0.0
    %727 = vmatprep.subr.mxu0 0.0
    %728 = vmatpush1.msra.mxu0 0.0
    %729 = vmatprep.subr.mxu0 0.0
    %730 = vmatpush1.msra.mxu0 0.0
    %731 = vmatprep.subr.mxu0 0.0
    %732 = vmatpush1.msra.mxu0 0.0
    %733 = vmatprep.subr.mxu0 0.0
    %734 = vmatpush1.msra.mxu0 0.0
    %735 = vmatprep.subr.mxu0 0.0
    %736 = vmatpush1.msra.mxu0 0.0
    %737 = vmatprep.subr.mxu0 0.0
    %738 = vmatpush1.msra.mxu0 0.0
    %739 = vmatprep.subr.mxu0 0.0
    %740 = vmatpush1.msra.mxu0 0.0
    %741 = vmatprep.subr.mxu0 0.0
    %742 = vmatpush1.msra.mxu0 0.0
    %743 = vmatprep.subr.mxu0 0.0
    %744 = vmatpush1.msra.mxu0 0.0
    %745 = vmatprep.subr.mxu0 0.0
    %746 = vmatpush1.msra.mxu0 0.0
    %747 = vmatprep.subr.mxu0 0.0
    %748 = vmatpush1.msra.mxu0 0.0
    %749 = vmatprep.subr.mxu0 0.0
    %750 = vmatpush1.msra.mxu0 0.0
    %751 = vmatprep.subr.mxu0 0.0
    %752 = vmatpush1.msra.mxu0 0.0
    %753 = vmatprep.subr.mxu0 0.0
    %754 = vmatpush1.msra.mxu0 0.0
    %755 = vmatprep.subr.mxu0 0.0
    %756 = vmatpush1.msra.mxu0 0.0
    %757 = vmatprep.subr.mxu0 0.0
    %758 = vmatpush1.msra.mxu0 0.0
    %759 = vmatprep.subr.mxu0 0.0
    %760 = vmatpush1.msra.mxu0 0.0
    %761 = vmatprep.subr.mxu0 0.0
    %762 = vmatpush1.msra.mxu0 0.0
    %763 = vmatprep.subr.mxu0 0.0
    %764 = vmatpush1.msra.mxu0 0.0
    %765 = vmatprep.mubr.f32.mxu0 0.0
    %766 = vmatmul.mubr.f32.gmra.mrb[0].mxu0 %v699
    %v767 = vpop.f32.mrb[0].mxu0
    %v768 = vadd.f32 0.0, %v767
    %v769 = vpop.f32.mrb[0].mxu0
    %770 = vdwg.mxu0
    %v771 = vadd.f32 %v695, %v768
    %v772 = vxor.u32 %v771, 2147483648
    %v773 = vmul.f32 %v772, 1.442695
    %v774 = vpow.pop %v773
    %v775 = vadd.f32 %v774, 1.0
    %v776 = vrcp.pop %v775
    %v777 = vmul.f32 1.0, %v776
    %v778 = vtanh.pop %v771
    %v779 = vmul.f32 %v777, %v687
    %781 = vrot.lane.b32.xlu0 %v778, 32
    %v782 = vpop.permute.xlu0 %781
    %v784 = vmul.f32 %v777, %v782
    %786 = vrot.lane.b32.xlu0 %v784, 32
    %v787 = vpop.permute.xlu0 %786
    %v789 = vadd.f32 %v779, %v787
    %v790 = vtanh.pop %v789
    %792 = vrot.lane.b32.xlu0 %v790, 32
    %v793 = vpop.permute.xlu0 %792
    %v795 = vmul.f32 %v777, %v793
    %s796 = scalar_lea.vmem [#allocation6], 56
    %v797 = vld [vmem:[%s796] sm:$0xff]
    %799 = vrot.lane.b32.xlu0 %v795, 64
    %v800 = vpop.permute.xlu0 %799
    %v801 = vsel %vm81, %v800, 0
    %803 = vmatprep.subr.mxu0 0.0
    %804 = vmatpush1.msra.mxu0 %v74
    %805 = vmatprep.subr.mxu0 0.0
    %806 = vmatpush1.msra.mxu0 %v75
    %807 = vmatprep.subr.mxu0 0.0
    %808 = vmatpush1.msra.mxu0 %v76
    %809 = vmatprep.subr.mxu0 0.0
    %810 = vmatpush1.msra.mxu0 %v77
    %811 = vmatprep.subr.mxu0 0.0
    %812 = vmatpush1.msra.mxu0 0.0
    %813 = vmatprep.subr.mxu0 0.0
    %814 = vmatpush1.msra.mxu0 0.0
    %815 = vmatprep.subr.mxu0 0.0
    %816 = vmatpush1.msra.mxu0 0.0
    %817 = vmatprep.subr.mxu0 0.0
    %818 = vmatpush1.msra.mxu0 0.0
    %819 = vmatprep.subr.mxu0 0.0
    %820 = vmatpush1.msra.mxu0 0.0
    %821 = vmatprep.subr.mxu0 0.0
    %822 = vmatpush1.msra.mxu0 0.0
    %823 = vmatprep.subr.mxu0 0.0
    %824 = vmatpush1.msra.mxu0 0.0
    %825 = vmatprep.subr.mxu0 0.0
    %826 = vmatpush1.msra.mxu0 0.0
    %827 = vmatprep.subr.mxu0 0.0
    %828 = vmatpush1.msra.mxu0 0.0
    %829 = vmatprep.subr.mxu0 0.0
    %830 = vmatpush1.msra.mxu0 0.0
    %831 = vmatprep.subr.mxu0 0.0
    %832 = vmatpush1.msra.mxu0 0.0
    %833 = vmatprep.subr.mxu0 0.0
    %834 = vmatpush1.msra.mxu0 0.0
    %835 = vmatprep.subr.mxu0 0.0
    %836 = vmatpush1.msra.mxu0 0.0
    %837 = vmatprep.subr.mxu0 0.0
    %838 = vmatpush1.msra.mxu0 0.0
    %839 = vmatprep.subr.mxu0 0.0
    %840 = vmatpush1.msra.mxu0 0.0
    %841 = vmatprep.subr.mxu0 0.0
    %842 = vmatpush1.msra.mxu0 0.0
    %843 = vmatprep.subr.mxu0 0.0
    %844 = vmatpush1.msra.mxu0 0.0
    %845 = vmatprep.subr.mxu0 0.0
    %846 = vmatpush1.msra.mxu0 0.0
    %847 = vmatprep.subr.mxu0 0.0
    %848 = vmatpush1.msra.mxu0 0.0
    %849 = vmatprep.subr.mxu0 0.0
    %850 = vmatpush1.msra.mxu0 0.0
    %851 = vmatprep.subr.mxu0 0.0
    %852 = vmatpush1.msra.mxu0 0.0
    %853 = vmatprep.subr.mxu0 0.0
    %854 = vmatpush1.msra.mxu0 0.0
    %855 = vmatprep.subr.mxu0 0.0
    %856 = vmatpush1.msra.mxu0 0.0
    %857 = vmatprep.subr.mxu0 0.0
    %858 = vmatpush1.msra.mxu0 0.0
    %859 = vmatprep.subr.mxu0 0.0
    %860 = vmatpush1.msra.mxu0 0.0
    %861 = vmatprep.subr.mxu0 0.0
    %862 = vmatpush1.msra.mxu0 0.0
    %863 = vmatprep.subr.mxu0 0.0
    %864 = vmatpush1.msra.mxu0 0.0
    %865 = vmatprep.subr.mxu0 0.0
    %866 = vmatpush1.msra.mxu0 0.0
    %867 = vmatprep.mubr.f32.mxu0 0.0
    %868 = vmatmul.mubr.f32.gmra.mrb[0].mxu0 %v801
    %v869 = vpop.f32.mrb[0].mxu0
    %v870 = vadd.f32 0.0, %v869
    %v871 = vpop.f32.mrb[0].mxu0
    %872 = vdwg.mxu0
    %v873 = vadd.f32 %v797, %v870
    %v874 = vxor.u32 %v873, 2147483648
    %v875 = vmul.f32 %v874, 1.442695
    %v876 = vpow.pop %v875
    %v877 = vadd.f32 %v876, 1.0
    %v878 = vrcp.pop %v877
    %v879 = vmul.f32 1.0, %v878
    %v880 = vtanh.pop %v873
    %v881 = vmul.f32 %v879, %v789
    %883 = vrot.lane.b32.xlu0 %v880, 32
    %v884 = vpop.permute.xlu0 %883
    %v886 = vmul.f32 %v879, %v884
    %888 = vrot.lane.b32.xlu0 %v886, 32
    %v889 = vpop.permute.xlu0 %888
    %v891 = vadd.f32 %v881, %v889
    %v892 = vtanh.pop %v891
    %894 = vrot.lane.b32.xlu0 %v892, 32
    %v895 = vpop.permute.xlu0 %894
    %v897 = vmul.f32 %v879, %v895
    %899 = vrot.lane.b32.xlu0 %v897, 64
    %v900 = vpop.permute.xlu0 %899
    %902 = vst.msk [vmem:[#allocation3] sm:$0xff] %vm81, %v900
    %904 = vrot.lane.b32.xlu0 %v891, 96
    %v905 = vpop.permute.xlu0 %904
    %907 = vst.msk [vmem:[#allocation4] sm:$0xff] %vm81, %v905
    // Predicated region
    $region34: #{tpu_custom_call.1} parent=1 // pred_check
      %p908 = pneg %p53
    $region35: #{tpu_custom_call.1} parent=1 // pred_check_branch
      %910 = sbr.rel (%p908) target = $region37
    $region36: #{tpu_custom_call.1} parent=1 // pred_region
      %v911 = vsel %vm81, %v900, 0.0
      %912 = vadd.xlane.f32.xlu0 %v911
      %v913 = vpop.xlane.xlu0 %912
      %v914 = vrcp.pop 32.0
      %v915 = vmul.f32 %v913, %v914
      %v916 = vsub.f32 %v897, %v915
      %v917 = vmul.f32 %v916, %v916
      %919 = vrot.lane.b32.xlu0 %v917, 64
      %v920 = vpop.permute.xlu0 %919
      %v922 = vsel %vm81, %v920, 0.0
      %923 = vadd.xlane.f32.xlu0 %v922
      %v924 = vpop.xlane.xlu0 %923
      %v925 = vmul.f32 %v924, %v914
      %v926 = vadd.f32 %v925, 1e-05
      %v927 = vrsqrt.pop %v926
      %v928 = vmul.f32 %v916, %v927
      %v929 = vld [vmem:[#allocation9] sm:$0x1]
      %v931 = vlaneseq
      %v932 = vshrl.u32 %v931, 7
      %v933 = vsub.s32 0, %v932
      %v934 = vrot.slane %v929, %v933
      %935 = vrot.lane.b32.xlu0 %v934, 64
      %v936 = vpop.permute.xlu0 %935
      %v938 = vmul.f32 %v928, %v936
      %v939 = vld [vmem:[#allocation11] sm:$0x1]
      %v941 = vlaneseq
      %v942 = vshrl.u32 %v941, 7
      %v943 = vsub.s32 0, %v942
      %v944 = vrot.slane %v939, %v943
      %945 = vrot.lane.b32.xlu0 %v944, 64
      %v946 = vpop.permute.xlu0 %945
      %v948 = vadd.f32 %v938, %v946
      %950 = vrot.lane.b32.xlu0 %v948, 64
      %v951 = vpop.permute.xlu0 %950
      %953 = vst.msk [vmem:[#allocation12] sm:$0xff] %vm81, %v951
    $region37: #{tpu_custom_call.1} parent=1 // pred_fallthru
      _
    // Predicated region
    $region38: #{tpu_custom_call.1} parent=1 // pred_check
      _
    $region39: #{tpu_custom_call.1} parent=1 // pred_check_branch
      %955 = sbr.rel (0) target = $region41
    $region40: #{tpu_custom_call.1} parent=1 // pred_region
      %s957 = ssub.s32 128, 128
      %958 = vsyncadd [#allocation8], %s957
      %s960 = sshll.u32 [#allocation12], 4
      %s961 = int_to_ptr.vmem [resolvable:$true] %s960
      %963 = dma.vmem_to_hbm [thread:$0]  %s961, 128, %s4, [#allocation8]
    $region41: #{tpu_custom_call.1} parent=1 // pred_fallthru
      _
    // Predicated region
    $region42: #{tpu_custom_call.1} parent=1 // pred_check
      _
    $region43: #{tpu_custom_call.1} parent=1 // pred_check_branch
      %965 = sbr.rel (0) target = $region45
    $region44: #{tpu_custom_call.1} parent=1 // pred_region
      %966 = dma.done [#allocation8], 128
    $region45: #{tpu_custom_call.1} parent=1 // pred_fallthru
      _
    %967 = vsyncpa [#allocation7], 1
    %968 = vsyncpa [#allocation10], 1
    %969 = vsyncpa [#allocation8], 1
  %970 = vsyncmov [#allocation5]
  %s971 = vpop.sfrf %970
  %p972 = scmp.eq.s32.totalorder %s971, 0
  %p973 = pneg %p972
  %975 = shalt.err (%p973)

</llo_original>
